<compile_context>
chip_gen: v6e
topology: v6e:2x2x1
jax: 0.10.0
libtpu: 0.0.40
codegen_flags: <defaults>
</compile_context>

<pallas_src>
import functools

import jax
import jax.numpy as jnp
from jax import lax
from jax.experimental import pallas as pl
from jax.experimental.pallas import tpu as pltpu

LANE = 128
SUBLANE = 16          # bf16 packs 16 rows per vreg tile
MAX_BATCH_TILE = 2048


def _round_up(n, m):
    return (n + m - 1) // m * m


def _choose_batch_tile(B):
    """Batch tile: big (amortize ~0.35us/step overhead) but >= 2 grid steps
    when possible so the parallel axis spans both v7x TensorCores."""
    if B <= SUBLANE:
        return SUBLANE
    half = _round_up((B + 1) // 2, SUBLANE)
    return max(SUBLANE, min(MAX_BATCH_TILE, half))


# ---------------------------------------------------------------------------
# Kernel
# ---------------------------------------------------------------------------
def _policy_kernel(x_ref, w1_ref, v1_ref, w2_ref, b2_ref, o_ref,
                   *, inv_fc1, fc1_pad, act_pad):
    f32 = jnp.float32
    bf16 = jnp.bfloat16

    # fc1: (TB, in) @ (in, FC1_PAD) + b1   -- bf16 MXU, f32 accumulate.
    # x arrives f32 from HBM; cast here (no wrapper pass over x).
    x16 = x_ref[...].astype(bf16)
    h = jnp.dot(x16, w1_ref[...], preferred_element_type=f32) + v1_ref[0:1, :]

    # LayerNorm statistics on the MXU: multiplying by an all-ones matrix sums
    # across lanes AND broadcasts the result to every lane in one matmul.
    # Pad columns of h are exactly 0 (zero-padded w1/b1), so full-lane sums
    # equal true-lane sums; divide by the TRUE feature count.
    ones_h = jnp.full((fc1_pad, fc1_pad), 1.0, dtype=bf16)
    h16 = h.astype(bf16)
    mean = jnp.dot(h16, ones_h, preferred_element_type=f32) * inv_fc1
    ex2 = jnp.dot((h * h).astype(bf16), ones_h, preferred_element_type=f32) * inv_fc1
    var = jnp.maximum(ex2 - mean * mean, 0.0)
    hn = (h - mean) * lax.rsqrt(var + 1e-5)
    # gamma/beta are zero in the pad lanes -> pad lanes become exactly 0.
    hn = hn * v1_ref[1:2, :] + v1_ref[2:3, :]

    # ReLU
    hn = jnp.maximum(hn, 0.0)

    # fc2: (TB, FC1_PAD) @ (FC1_PAD, ACT_PAD) + b2 (pad bias = -1e30).
    logits = jnp.dot(hn.astype(bf16), w2_ref[...],
                     preferred_element_type=f32) + b2_ref[...]

    # Softmax over dim=1: max stays on the XLU; the denominator sum goes to
    # the MXU (already broadcast across lanes); pad lanes exp to exactly 0.
    m = jnp.max(logits, axis=-1, keepdims=True)
    e = jnp.exp(logits - m)
    ones_a = jnp.full((act_pad, act_pad), 1.0, dtype=bf16)
    denom = jnp.dot(e.astype(bf16), ones_a, preferred_element_type=f32)
    o_ref[...] = (e * pl.reciprocal(denom, approx=True)).astype(o_ref.dtype)


# ---------------------------------------------------------------------------
# Parameter preparation (pad to lane-dense shapes, cast weights to bf16)
# ---------------------------------------------------------------------------
def prepare_params(params, action_size):
    """Pad raw params to 128-lane widths.  Returns padded params + true fc1."""
    w1, b1, gamma, beta, w2, b2 = [jnp.asarray(p, jnp.float32) for p in params]
    input_size, fc1 = w1.shape
    fc1_pad = _round_up(max(fc1, LANE), LANE)
    act_pad = _round_up(max(action_size, LANE), LANE)

    w1p = jnp.zeros((input_size, fc1_pad), jnp.float32)
    w1p = w1p.at[:, :fc1].set(w1).astype(jnp.bfloat16)

    # b1 / gamma / beta packed into one VMEM-resident (3, fc1_pad) operand.
    v1p = jnp.zeros((3, fc1_pad), jnp.float32)
    v1p = v1p.at[0, :fc1].set(b1)
    v1p = v1p.at[1, :fc1].set(gamma)
    v1p = v1p.at[2, :fc1].set(beta)

    w2p = jnp.zeros((fc1_pad, act_pad), jnp.float32)
    w2p = w2p.at[:fc1, :action_size].set(w2).astype(jnp.bfloat16)
    # -1e30 in pad lanes -> exp(pad - max) == 0 in the softmax.
    b2p = jnp.full((1, act_pad), -1e30, jnp.float32)
    b2p = b2p.at[:, :action_size].set(b2.reshape(1, -1))

    return (w1p, v1p, w2p, b2p), fc1


# ---------------------------------------------------------------------------
# Forward wrapper
# ---------------------------------------------------------------------------
def policy_imitation_forward(x, prepared_params, fc1_true, input_size, action_size):
    w1p, v1p, w2p, b2p = prepared_params
    fc1_pad = w1p.shape[1]
    act_pad = w2p.shape[1]

    # PyTorch view(-1, input_size); no extra pad/cast pass over x.
    x2d = x.reshape(-1, input_size)
    B = x2d.shape[0]

    TB = _choose_batch_tile(B)
    if B < TB:  # only for tiny batches (< 16 rows): keep block <= array rows
        x2d = jnp.pad(x2d, ((0, TB - B), (0, 0)))

    nsteps = pl.cdiv(x2d.shape[0], TB)   # partial last input block is fine
    b_out = nsteps * TB                  # output stays block/lane dense

    kernel = functools.partial(
        _policy_kernel,
        inv_fc1=1.0 / float(fc1_true),
        fc1_pad=fc1_pad,
        act_pad=act_pad,
    )

    out = pl.pallas_call(
        kernel,
        out_shape=jax.ShapeDtypeStruct((b_out, act_pad), jnp.bfloat16),
        grid=(nsteps,),
        in_specs=[
            pl.BlockSpec((TB, input_size), lambda i: (i, 0)),   # x tile
            pl.BlockSpec(w1p.shape, lambda i: (0, 0)),          # VMEM-resident
            pl.BlockSpec(v1p.shape, lambda i: (0, 0)),          # b1/gamma/beta
            pl.BlockSpec(w2p.shape, lambda i: (0, 0)),
            pl.BlockSpec(b2p.shape, lambda i: (0, 0)),
        ],
        out_specs=pl.BlockSpec((TB, act_pad), lambda i: (i, 0)),  # lane-dense bf16
        compiler_params=pltpu.CompilerParams(
            dimension_semantics=("parallel",),
            vmem_limit_bytes=48 * 1024 * 1024),
    )(x2d, w1p, v1p, w2p, b2p)

    # Strip batch/lane padding; upcast to f32 for downstream consumers.
    return out[:B, :action_size].astype(jnp.float32)


# ---------------------------------------------------------------------------
# Init & pure-JAX reference (same bf16 matmul path, unpadded)
# ---------------------------------------------------------------------------
def init_params(key, input_size, action_size, fc1_units=36):
    """PyTorch nn.Linear default init (U[-1/sqrt(fan_in), 1/sqrt(fan_in)]) and
    nn.LayerNorm defaults.  Weights stored transposed as (in, out)."""
    k1, k2, k3, k4 = jax.random.split(key, 4)
    bound1 = 1.0 / jnp.sqrt(input_size)
    bound2 = 1.0 / jnp.sqrt(fc1_units)
    w1 = jax.random.uniform(k1, (input_size, fc1_units), jnp.float32, -bound1, bound1)
    b1 = jax.random.uniform(k2, (fc1_units,), jnp.float32, -bound1, bound1)
    gamma = jnp.ones((fc1_units,), jnp.float32)
    beta = jnp.zeros((fc1_units,), jnp.float32)
    w2 = jax.random.uniform(k3, (fc1_units, action_size), jnp.float32, -bound2, bound2)
    b2 = jax.random.uniform(k4, (action_size,), jnp.float32, -bound2, bound2)
    return (w1, b1, gamma, beta, w2, b2)


def reference_forward(x, params, input_size):
    w1, b1, gamma, beta, w2, b2 = params
    x2d = x.reshape(-1, input_size)
    h = jnp.dot(x2d.astype(jnp.bfloat16), w1.astype(jnp.bfloat16),
                preferred_element_type=jnp.float32) + b1
    mean = jnp.mean(h, axis=-1, keepdims=True)
    var = jnp.mean((h - mean) ** 2, axis=-1, keepdims=True)
    hn = (h - mean) * lax.rsqrt(var + 1e-5) * gamma + beta
    hn = jnp.maximum(hn, 0.0)
    logits = jnp.dot(hn.astype(jnp.bfloat16), w2.astype(jnp.bfloat16),
                     preferred_element_type=jnp.float32) + b2
    return jax.nn.softmax(logits, axis=1)


def _check(out, ref, batch, action_size):
    assert out.shape == (batch, action_size)
    assert bool(jnp.all(jnp.isfinite(out)))
    row_sums = jnp.sum(out, axis=1)
    # bf16 output store + approx reciprocal + bf16 reduction operands give a
    # few-1e-3 error envelope; 1e-2 is a comfortable bound.
    assert bool(jnp.all(jnp.abs(row_sums - 1.0) < 1e-2))
    assert bool(jnp.max(jnp.abs(out - ref)) < 1e-2)


if __name__ == "__main__":
    input_size = 32
    action_size = 10
    fc1_units = 36

    key = jax.random.PRNGKey(0)
    kx, kx2, kp = jax.random.split(key, 3)
    params = init_params(kp, input_size, action_size, fc1_units)
    prepared, fc1_true = prepare_params(params, action_size)

    # Small batch (pads up to one 16-row tile).
    batch = 8
    x = jax.random.normal(kx, (batch, input_size), jnp.float32)
    out = policy_imitation_forward(x, prepared, fc1_true, input_size, action_size)
    out = jax.block_until_ready(out)
    _check(out, reference_forward(x, params, input_size), batch, action_size)

    # Larger batch: 2 grid steps with a partial (ragged) last input block.
    batch2 = 40
    x2 = jax.random.normal(kx2, (batch2, input_size), jnp.float32)
    out2 = policy_imitation_forward(x2, prepared, fc1_true, input_size, action_size)
    out2 = jax.block_until_ready(out2)
    _check(out2, reference_forward(x2, params, input_size), batch2, action_size)

    print("KERNEL_OK")
</pallas_src>

<mosaic_0001>
module attributes {stable_mosaic.version = 11 : i64} {
  func.func @_policy_kernel(%arg0: i32, %arg1: memref<16x32xf32, #tpu.memory_space<vmem>>, %arg2: memref<32x128xbf16, #tpu.memory_space<vmem>>, %arg3: memref<3x128xf32, #tpu.memory_space<vmem>>, %arg4: memref<128x128xbf16, #tpu.memory_space<vmem>>, %arg5: memref<1x128xf32, #tpu.memory_space<vmem>>, %arg6: memref<16x128xbf16, #tpu.memory_space<vmem>>) attributes {dimension_semantics = [#tpu.dimension_semantics<parallel>], iteration_bounds = array<i64: 1>, scalar_prefetch = 0 : i64, scratch_operands = 0 : i64, tpu.core_type = #tpu.core_type<tc>, window_params = [{transform_indices = @transform_0, window_bounds = array<i64: 16, 32>}, {pipeline_mode = #tpu.pipeline_mode<synchronous>, transform_indices = @transform_1, window_bounds = array<i64: 32, 128>}, {pipeline_mode = #tpu.pipeline_mode<synchronous>, transform_indices = @transform_2, window_bounds = array<i64: 3, 128>}, {pipeline_mode = #tpu.pipeline_mode<synchronous>, transform_indices = @transform_3, window_bounds = array<i64: 128, 128>}, {pipeline_mode = #tpu.pipeline_mode<synchronous>, transform_indices = @transform_4, window_bounds = array<i64: 1, 128>}, {transform_indices = @transform_5, window_bounds = array<i64: 16, 128>}]} {
    %c0 = arith.constant 0 : index
    %c0_0 = arith.constant 0 : index
    %0 = vector.load %arg1[%c0, %c0_0] : memref<16x32xf32, #tpu.memory_space<vmem>>, vector<16x32xf32>
    %1 = arith.truncf %0 : vector<16x32xf32> to vector<16x32xbf16>
    %c0_1 = arith.constant 0 : index
    %c0_2 = arith.constant 0 : index
    %2 = vector.load %arg2[%c0_1, %c0_2] : memref<32x128xbf16, #tpu.memory_space<vmem>>, vector<32x128xbf16>
    %cst = arith.constant dense<0.000000e+00> : vector<16x128xf32>
    %3 = tpu.matmul %1, %2, %cst {dimension_numbers = #tpu.dot_dimension_numbers<[1], [0], [0], [1], [0, 0, 1, 1], [], []>} : vector<16x32xbf16>, vector<32x128xbf16>, vector<16x128xf32> -> vector<16x128xf32>
    %c0_3 = arith.constant 0 : index
    %c0_4 = arith.constant 0 : index
    %4 = vector.load %arg3[%c0_3, %c0_4] : memref<3x128xf32, #tpu.memory_space<vmem>>, vector<1x128xf32>
    %5 = vector.broadcast %4 : vector<1x128xf32> to vector<16x128xf32>
    %6 = arith.addf %3, %5 : vector<16x128xf32>
    %cst_5 = arith.constant 1.000000e+00 : bf16
    %7 = vector.broadcast %cst_5 : bf16 to vector<128x128xbf16>
    %8 = arith.truncf %6 : vector<16x128xf32> to vector<16x128xbf16>
    %cst_6 = arith.constant dense<0.000000e+00> : vector<16x128xf32>
    %9 = tpu.matmul %8, %7, %cst_6 {dimension_numbers = #tpu.dot_dimension_numbers<[1], [0], [0], [1], [0, 0, 1, 1], [], []>} : vector<16x128xbf16>, vector<128x128xbf16>, vector<16x128xf32> -> vector<16x128xf32>
    %cst_7 = arith.constant 0.027777778 : f32
    %10 = vector.broadcast %cst_7 : f32 to vector<16x128xf32>
    %11 = arith.mulf %9, %10 : vector<16x128xf32>
    %12 = arith.mulf %6, %6 : vector<16x128xf32>
    %13 = arith.truncf %12 : vector<16x128xf32> to vector<16x128xbf16>
    %cst_8 = arith.constant dense<0.000000e+00> : vector<16x128xf32>
    %14 = tpu.matmul %13, %7, %cst_8 {dimension_numbers = #tpu.dot_dimension_numbers<[1], [0], [0], [1], [0, 0, 1, 1], [], []>} : vector<16x128xbf16>, vector<128x128xbf16>, vector<16x128xf32> -> vector<16x128xf32>
    %cst_9 = arith.constant 0.027777778 : f32
    %15 = vector.broadcast %cst_9 : f32 to vector<16x128xf32>
    %16 = arith.mulf %14, %15 : vector<16x128xf32>
    %17 = arith.mulf %11, %11 : vector<16x128xf32>
    %18 = arith.subf %16, %17 : vector<16x128xf32>
    %cst_10 = arith.constant 0.000000e+00 : f32
    %19 = vector.broadcast %cst_10 : f32 to vector<16x128xf32>
    %20 = arith.maximumf %18, %19 : vector<16x128xf32>
    %21 = arith.subf %6, %11 : vector<16x128xf32>
    %cst_11 = arith.constant 9.99999974E-6 : f32
    %22 = vector.broadcast %cst_11 : f32 to vector<16x128xf32>
    %23 = arith.addf %20, %22 : vector<16x128xf32>
    %24 = math.rsqrt %23 : vector<16x128xf32>
    %25 = arith.mulf %21, %24 : vector<16x128xf32>
    %c1 = arith.constant 1 : index
    %c0_12 = arith.constant 0 : index
    %26 = vector.load %arg3[%c1, %c0_12] : memref<3x128xf32, #tpu.memory_space<vmem>>, vector<1x128xf32>
    %27 = vector.broadcast %26 : vector<1x128xf32> to vector<16x128xf32>
    %28 = arith.mulf %25, %27 : vector<16x128xf32>
    %c2 = arith.constant 2 : index
    %c0_13 = arith.constant 0 : index
    %29 = vector.load %arg3[%c2, %c0_13] : memref<3x128xf32, #tpu.memory_space<vmem>>, vector<1x128xf32>
    %30 = vector.broadcast %29 : vector<1x128xf32> to vector<16x128xf32>
    %31 = arith.addf %28, %30 : vector<16x128xf32>
    %cst_14 = arith.constant 0.000000e+00 : f32
    %32 = vector.broadcast %cst_14 : f32 to vector<16x128xf32>
    %33 = arith.maximumf %31, %32 : vector<16x128xf32>
    %34 = arith.truncf %33 : vector<16x128xf32> to vector<16x128xbf16>
    %c0_15 = arith.constant 0 : index
    %c0_16 = arith.constant 0 : index
    %35 = vector.load %arg4[%c0_15, %c0_16] : memref<128x128xbf16, #tpu.memory_space<vmem>>, vector<128x128xbf16>
    %cst_17 = arith.constant dense<0.000000e+00> : vector<16x128xf32>
    %36 = tpu.matmul %34, %35, %cst_17 {dimension_numbers = #tpu.dot_dimension_numbers<[1], [0], [0], [1], [0, 0, 1, 1], [], []>} : vector<16x128xbf16>, vector<128x128xbf16>, vector<16x128xf32> -> vector<16x128xf32>
    %c0_18 = arith.constant 0 : index
    %c0_19 = arith.constant 0 : index
    %37 = vector.load %arg5[%c0_18, %c0_19] : memref<1x128xf32, #tpu.memory_space<vmem>>, vector<1x128xf32>
    %38 = vector.broadcast %37 : vector<1x128xf32> to vector<16x128xf32>
    %39 = arith.addf %36, %38 : vector<16x128xf32>
    %cst_20 = arith.constant dense<0xFF800000> : vector<16xf32>
    %40 = vector.multi_reduction <maximumf>, %39, %cst_20 [1] : vector<16x128xf32> to vector<16xf32>
    %41 = vector.shape_cast %40 : vector<16xf32> to vector<16x1xf32>
    %42 = vector.broadcast %41 : vector<16x1xf32> to vector<16x128xf32>
    %43 = arith.subf %39, %42 : vector<16x128xf32>
    %44 = math.exp %43 : vector<16x128xf32>
    %cst_21 = arith.constant 1.000000e+00 : bf16
    %45 = vector.broadcast %cst_21 : bf16 to vector<128x128xbf16>
    %46 = arith.truncf %44 : vector<16x128xf32> to vector<16x128xbf16>
    %cst_22 = arith.constant dense<0.000000e+00> : vector<16x128xf32>
    %47 = tpu.matmul %46, %45, %cst_22 {dimension_numbers = #tpu.dot_dimension_numbers<[1], [0], [0], [1], [0, 0, 1, 1], [], []>} : vector<16x128xbf16>, vector<128x128xbf16>, vector<16x128xf32> -> vector<16x128xf32>
    %48 = tpu.reciprocal %47 {approx = true} : vector<16x128xf32> -> vector<16x128xf32>
    %49 = arith.mulf %44, %48 : vector<16x128xf32>
    %50 = arith.truncf %49 : vector<16x128xf32> to vector<16x128xbf16>
    %c0_23 = arith.constant 0 : index
    %c0_24 = arith.constant 0 : index
    %51 = vector.load %arg6[%c0_23, %c0_24] : memref<16x128xbf16, #tpu.memory_space<vmem>>, vector<16x128xbf16>
    tpu.vector_store %arg6[%c0_23, %c0_24], %50 {strides = array<i32>} : memref<16x128xbf16, #tpu.memory_space<vmem>>, vector<16x128xbf16>,
    return
  }
  func.func @transform_0(%arg0: i32) -> (i32, i32) {
    %c0_i32 = arith.constant 0 : i32
    %c0_i32_0 = arith.constant 0 : i32
    return %arg0, %c0_i32 : i32, i32
  }
  func.func @transform_1(%arg0: i32) -> (i32, i32) {
    %c0_i32 = arith.constant 0 : i32
    %c0_i32_0 = arith.constant 0 : i32
    %c0_i32_1 = arith.constant 0 : i32
    return %c0_i32, %c0_i32_0 : i32, i32
  }
  func.func @transform_2(%arg0: i32) -> (i32, i32) {
    %c0_i32 = arith.constant 0 : i32
    %c0_i32_0 = arith.constant 0 : i32
    %c0_i32_1 = arith.constant 0 : i32
    return %c0_i32, %c0_i32_0 : i32, i32
  }
  func.func @transform_3(%arg0: i32) -> (i32, i32) {
    %c0_i32 = arith.constant 0 : i32
    %c0_i32_0 = arith.constant 0 : i32
    %c0_i32_1 = arith.constant 0 : i32
    return %c0_i32, %c0_i32_0 : i32, i32
  }
  func.func @transform_4(%arg0: i32) -> (i32, i32) {
    %c0_i32 = arith.constant 0 : i32
    %c0_i32_0 = arith.constant 0 : i32
    %c0_i32_1 = arith.constant 0 : i32
    return %c0_i32, %c0_i32_0 : i32, i32
  }
  func.func @transform_5(%arg0: i32) -> (i32, i32) {
    %c0_i32 = arith.constant 0 : i32
    %c0_i32_0 = arith.constant 0 : i32
    return %arg0, %c0_i32 : i32, i32
  }
}

</mosaic_0001>

<llo_original>
// kernel: tpu_custom_call.1
$region0: #{tpu_custom_call.1}
  #allocation0 [shape = 'u32[]', space=smem, size = 0x4, offset = 0x4, fixed_abs, tag = 'smem constant byte address 0x4 - core index']
  #allocation1 [shape = 'u32[144,128]{1,0:T(1,128)}', space=vmem, size = 0x12000, scoped, tag = 'internal scratch']
  %s0 = inlined_call_operand.hbm [shape: f32[16,32], index: 0, kind: input, shape index: {}]
  %s1 = inlined_call_operand.hbm [shape: bf16[32,128], index: 1, kind: input, shape index: {}]
  %s2 = inlined_call_operand.hbm [shape: f32[3,128], index: 2, kind: input, shape index: {}]
  %s3 = inlined_call_operand.hbm [shape: bf16[128,128], index: 3, kind: input, shape index: {}]
  %s4 = inlined_call_operand.vmem [shape: f32[1,128], index: 4, kind: input, shape index: {}]
  %s5 = inlined_call_operand.hbm [shape: bf16[16,128], index: 5, kind: output, shape index: {}]
  %s6 = sld [smem:[#allocation0]]
  $region46: #{tpu_custom_call.1} parent=0
    _
  %s8 = ssub.s32 1, %s6
  %s9 = scalar_select 0, %s8, %s6
  $region1: #{tpu_custom_call.1} parent=0
    #allocation2 [shape = 'u8[8192]{0}', space=vmem, size = 0x2000, scoped, tag = 'input window, operand 0, single buffered']
    #allocation3 [shape = 's32[1]{0}', space=sflag, size = 0x4, scoped, tag = 'scoped memory for tpu_custom_call.1']
    #allocation4 [shape = 's32[1]{0}', space=sflag, size = 0x4, scoped, tag = 'scoped memory for tpu_custom_call.1']
    #allocation5 [shape = 'u8[8192]{0}', space=vmem, size = 0x2000, scoped, tag = 'input window, operand 1, single buffered']
    #allocation6 [shape = 's32[1]{0}', space=sflag, size = 0x4, scoped, tag = 'scoped memory for tpu_custom_call.1']
    #allocation7 [shape = 'u8[2048]{0}', space=vmem, size = 0x800, scoped, tag = 'input window, operand 2, single buffered']
    #allocation8 [shape = 'u8[32768]{0}', space=vmem, size = 0x8000, scoped, tag = 'input window, operand 3, single buffered']
    #allocation9 [shape = 's32[1]{0}', space=sflag, size = 0x4, scoped, tag = 'scoped memory for tpu_custom_call.1']
    #allocation10 [shape = 'u8[4096]{0}', space=vmem, size = 0x1000, scoped, tag = 'output window, operand 0, single buffered']
    %10 = vsyncpa [#allocation3], 0
    %11 = vsyncpa [#allocation6], 0
    %12 = vsyncpa [#allocation9], 0
    %13 = vsyncpa [#allocation4], 0
    // Predicated region
    $region2: #{tpu_custom_call.1} parent=1 // pred_check
      _
    $region3: #{tpu_custom_call.1} parent=1 // pred_check_branch
      %15 = sbr.rel (0) target = $region5
    $region4: #{tpu_custom_call.1} parent=1 // pred_region
      %s17 = ssub.s32 256, 256
      %18 = vsyncadd [#allocation3], %s17
      %s19 = sshll.u32 [#allocation2], 4
      %s20 = int_to_ptr.vmem [resolvable:$true] %s19
      %25 = dma.hbm_to_vmem [thread:$0]  %s0, 256, %s20, [#allocation3], 128, 128, 8
    $region5: #{tpu_custom_call.1} parent=1 // pred_fallthru
      _
    // Predicated region
    $region6: #{tpu_custom_call.1} parent=1 // pred_check
      _
    $region7: #{tpu_custom_call.1} parent=1 // pred_check_branch
      %27 = sbr.rel (0) target = $region9
    $region8: #{tpu_custom_call.1} parent=1 // pred_region
      %s29 = ssub.s32 256, 256
      %30 = vsyncadd [#allocation6], %s29
      %s31 = sshll.u32 [#allocation5], 4
      %s32 = int_to_ptr.vmem [resolvable:$true] %s31
      %37 = dma.hbm_to_vmem [thread:$0]  %s1, 256, %s32, [#allocation6], 64, 64, 4
    $region9: #{tpu_custom_call.1} parent=1 // pred_fallthru
      _
    // Predicated region
    $region10: #{tpu_custom_call.1} parent=1 // pred_check
      _
    $region11: #{tpu_custom_call.1} parent=1 // pred_check_branch
      %39 = sbr.rel (0) target = $region13
    $region12: #{tpu_custom_call.1} parent=1 // pred_region
      %s41 = ssub.s32 64, 64
      %42 = vsyncadd [#allocation6], %s41
      %s44 = sshll.u32 [#allocation7], 4
      %s45 = int_to_ptr.vmem [resolvable:$true] %s44
      %47 = dma.hbm_to_vmem [thread:$0]  %s2, 64, %s45, [#allocation6]
    $region13: #{tpu_custom_call.1} parent=1 // pred_fallthru
      _
    // Predicated region
    $region14: #{tpu_custom_call.1} parent=1 // pred_check
      _
    $region15: #{tpu_custom_call.1} parent=1 // pred_check_branch
      %49 = sbr.rel (0) target = $region17
    $region16: #{tpu_custom_call.1} parent=1 // pred_region
      %s51 = ssub.s32 1024, 1024
      %52 = vsyncadd [#allocation9], %s51
      %s53 = sshll.u32 [#allocation8], 4
      %s54 = int_to_ptr.vmem [resolvable:$true] %s53
      %59 = dma.hbm_to_vmem [thread:$0]  %s3, 1024, %s54, [#allocation9], 64, 64, 4
    $region17: #{tpu_custom_call.1} parent=1 // pred_fallthru
      _
    // Predicated region
    $region18: #{tpu_custom_call.1} parent=1 // pred_check
      _
    $region19: #{tpu_custom_call.1} parent=1 // pred_check_branch
      %61 = sbr.rel (0) target = $region21
    $region20: #{tpu_custom_call.1} parent=1 // pred_region
      _
    $region21: #{tpu_custom_call.1} parent=1 // pred_fallthru
      _
    // Predicated region
    $region22: #{tpu_custom_call.1} parent=1 // pred_check
      _
    $region23: #{tpu_custom_call.1} parent=1 // pred_check_branch
      %63 = sbr.rel (0) target = $region25
    $region24: #{tpu_custom_call.1} parent=1 // pred_region
      %64 = dma.done [#allocation3], 256
    $region25: #{tpu_custom_call.1} parent=1 // pred_fallthru
      _
    // Predicated region
    $region26: #{tpu_custom_call.1} parent=1 // pred_check
      _
    $region27: #{tpu_custom_call.1} parent=1 // pred_check_branch
      %66 = sbr.rel (0) target = $region29
    $region28: #{tpu_custom_call.1} parent=1 // pred_region
      %67 = dma.done [#allocation6], 256
    $region29: #{tpu_custom_call.1} parent=1 // pred_fallthru
      _
    // Predicated region
    $region30: #{tpu_custom_call.1} parent=1 // pred_check
      _
    $region31: #{tpu_custom_call.1} parent=1 // pred_check_branch
      %69 = sbr.rel (0) target = $region33
    $region32: #{tpu_custom_call.1} parent=1 // pred_region
      %70 = dma.done [#allocation6], 64
    $region33: #{tpu_custom_call.1} parent=1 // pred_fallthru
      _
    // Predicated region
    $region34: #{tpu_custom_call.1} parent=1 // pred_check
      _
    $region35: #{tpu_custom_call.1} parent=1 // pred_check_branch
      %72 = sbr.rel (0) target = $region37
    $region36: #{tpu_custom_call.1} parent=1 // pred_region
      %73 = dma.done [#allocation9], 1024
    $region37: #{tpu_custom_call.1} parent=1 // pred_fallthru
      _
    %v76 = vld [vmem:[#allocation2] sm:$0xff]
    %v77 = vld [vmem:[#allocation2 + $0x8] sm:$0xff]
    %v78 = vpack.c.bf16 %v77, %v76
    %v79 = vld [vmem:[#allocation5] sm:$0xf]
    %v80 = vld [vmem:[#allocation5 + $0x4] sm:$0xf]
    %v81 = vld [vmem:[#allocation5 + $0x8] sm:$0xf]
    %v82 = vld [vmem:[#allocation5 + $0xc] sm:$0xf]
    %v83 = vld [vmem:[#allocation7] sm:$0x1]
    %v84 = vlaneseq
    %v85 = vshrl.u32 %v84, 7
    %v86 = vsub.s32 0, %v85
    %v87 = vrot.slane %v83, %v86
    %v92 = vunpack.c.l.b16 %v79
    %v93 = vunpack.c.l.b16 %v80
    %v94 = vunpack.c.l.b16 %v81
    %v95 = vunpack.c.l.b16 %v82
    %v96 = vpack.c.b16 %v93, %v92
    %v97 = vpack.c.b16 %v95, %v94
    %vm100 = vcmask 261120
    %v102 = vsel %vm100, %v78, 0
    %104 = vmatprep.subr.bf16.mxu0 0
    %105 = vmatpush1.bf16.msra.mxu0 0
    %106 = vmatprep.subr.bf16.mxu0 0
    %107 = vmatpush1.bf16.msra.mxu0 0
    %108 = vmatprep.subr.bf16.mxu0 0
    %109 = vmatpush1.bf16.msra.mxu0 0
    %110 = vmatprep.subr.bf16.mxu0 0
    %111 = vmatpush1.bf16.msra.mxu0 0
    %112 = vmatprep.subr.bf16.mxu0 0
    %113 = vmatpush1.bf16.msra.mxu0 0
    %114 = vmatprep.subr.bf16.mxu0 0
    %115 = vmatpush1.bf16.msra.mxu0 0
    %116 = vmatprep.subr.bf16.mxu0 0
    %117 = vmatpush1.bf16.msra.mxu0 %v97
    %118 = vmatprep.subr.bf16.mxu0 0
    %119 = vmatpush1.bf16.msra.mxu0 %v96
    %120 = vmatprep.subr.bf16.mxu0 0
    %121 = vmatpush2.bf16.msra.mxu0 0
    %122 = vmatprep.subr.bf16.mxu0 0
    %123 = vmatpush2.bf16.msra.mxu0 0
    %124 = vmatprep.subr.bf16.mxu0 0
    %125 = vmatpush2.bf16.msra.mxu0 0
    %126 = vmatprep.subr.bf16.mxu0 0
    %127 = vmatpush2.bf16.msra.mxu0 0
    %128 = vmatprep.subr.bf16.mxu0 0
    %129 = vmatpush2.bf16.msra.mxu0 0
    %130 = vmatprep.subr.bf16.mxu0 0
    %131 = vmatpush2.bf16.msra.mxu0 0
    %132 = vmatprep.subr.bf16.mxu0 0
    %133 = vmatpush2.bf16.msra.mxu0 0
    %134 = vmatprep.subr.bf16.mxu0 0
    %135 = vmatpush2.bf16.msra.mxu0 0
    %136 = vmatprep.mubr.bf16.mxu0 0
    %137 = vmatmul.mubr.bf16.gmra.mxu0 %v102
    %v138 = vpop.f32.mrf.mxu0
    %v139 = vadd.f32 %v87, %v138
    %v140 = vpop.f32.mrf.mxu0
    %v141 = vpop.f32.mrf.mxu0
    %v142 = vadd.f32 %v87, %v141
    %v143 = vpop.f32.mrf.mxu0
    %144 = vdwg.mxu0
    %v145 = vpack.c.bf16 %v142, %v139
    %146 = vmatprep.subr.bf16.mxu0 0
    %147 = vmatpush1.bf16.msra.mxu0 1065369472
    %148 = vmatprep.subr.bf16.mxu0 0
    %149 = vmatpush1.bf16.msra.mxu0 1065369472
    %150 = vmatprep.subr.bf16.mxu0 0
    %151 = vmatpush1.bf16.msra.mxu0 1065369472
    %152 = vmatprep.subr.bf16.mxu0 0
    %153 = vmatpush1.bf16.msra.mxu0 1065369472
    %154 = vmatprep.subr.bf16.mxu0 0
    %155 = vmatpush1.bf16.msra.mxu0 1065369472
    %156 = vmatprep.subr.bf16.mxu0 0
    %157 = vmatpush1.bf16.msra.mxu0 1065369472
    %158 = vmatprep.subr.bf16.mxu0 0
    %159 = vmatpush1.bf16.msra.mxu0 1065369472
    %160 = vmatprep.subr.bf16.mxu0 0
    %161 = vmatpush1.bf16.msra.mxu0 1065369472
    %162 = vmatprep.subr.bf16.mxu0 0
    %163 = vmatpush2.bf16.msra.mxu0 0
    %164 = vmatprep.subr.bf16.mxu0 0
    %165 = vmatpush2.bf16.msra.mxu0 0
    %166 = vmatprep.subr.bf16.mxu0 0
    %167 = vmatpush2.bf16.msra.mxu0 0
    %168 = vmatprep.subr.bf16.mxu0 0
    %169 = vmatpush2.bf16.msra.mxu0 0
    %170 = vmatprep.subr.bf16.mxu0 0
    %171 = vmatpush2.bf16.msra.mxu0 0
    %172 = vmatprep.subr.bf16.mxu0 0
    %173 = vmatpush2.bf16.msra.mxu0 0
    %174 = vmatprep.subr.bf16.mxu0 0
    %175 = vmatpush2.bf16.msra.mxu0 0
    %176 = vmatprep.subr.bf16.mxu0 0
    %177 = vmatpush2.bf16.msra.mxu0 0
    %178 = vmatprep.mubr.bf16.mxu0 0
    %179 = vmatmul.mubr.bf16.gmra.mxu0 %v145
    %v180 = vpop.f32.mrf.mxu0
    %v181 = vadd.f32 0.0, %v180
    %v182 = vpop.f32.mrf.mxu0
    %v183 = vpop.f32.mrf.mxu0
    %v184 = vadd.f32 0.0, %v183
    %v185 = vpop.f32.mrf.mxu0
    %186 = vdwg.mxu0
    %v187 = vmul.f32 %v181, 0.027777778
    %v188 = vmul.f32 %v184, 0.027777778
    %v189 = vmul.f32 %v139, %v139
    %v190 = vmul.f32 %v142, %v142
    %v191 = vpack.c.bf16 %v190, %v189
    %192 = vmatprep.subr.bf16.mxu0 0
    %193 = vmatpush1.bf16.msra.mxu0 1065369472
    %194 = vmatprep.subr.bf16.mxu0 0
    %195 = vmatpush1.bf16.msra.mxu0 1065369472
    %196 = vmatprep.subr.bf16.mxu0 0
    %197 = vmatpush1.bf16.msra.mxu0 1065369472
    %198 = vmatprep.subr.bf16.mxu0 0
    %199 = vmatpush1.bf16.msra.mxu0 1065369472
    %200 = vmatprep.subr.bf16.mxu0 0
    %201 = vmatpush1.bf16.msra.mxu0 1065369472
    %202 = vmatprep.subr.bf16.mxu0 0
    %203 = vmatpush1.bf16.msra.mxu0 1065369472
    %204 = vmatprep.subr.bf16.mxu0 0
    %205 = vmatpush1.bf16.msra.mxu0 1065369472
    %206 = vmatprep.subr.bf16.mxu0 0
    %207 = vmatpush1.bf16.msra.mxu0 1065369472
    %208 = vmatprep.subr.bf16.mxu0 0
    %209 = vmatpush2.bf16.msra.mxu0 0
    %210 = vmatprep.subr.bf16.mxu0 0
    %211 = vmatpush2.bf16.msra.mxu0 0
    %212 = vmatprep.subr.bf16.mxu0 0
    %213 = vmatpush2.bf16.msra.mxu0 0
    %214 = vmatprep.subr.bf16.mxu0 0
    %215 = vmatpush2.bf16.msra.mxu0 0
    %216 = vmatprep.subr.bf16.mxu0 0
    %217 = vmatpush2.bf16.msra.mxu0 0
    %218 = vmatprep.subr.bf16.mxu0 0
    %219 = vmatpush2.bf16.msra.mxu0 0
    %220 = vmatprep.subr.bf16.mxu0 0
    %221 = vmatpush2.bf16.msra.mxu0 0
    %222 = vmatprep.subr.bf16.mxu0 0
    %223 = vmatpush2.bf16.msra.mxu0 0
    %224 = vmatprep.mubr.bf16.mxu0 0
    %225 = vmatmul.mubr.bf16.gmra.mxu0 %v191
    %v226 = vpop.f32.mrf.mxu0
    %v227 = vadd.f32 0.0, %v226
    %v228 = vpop.f32.mrf.mxu0
    %v229 = vpop.f32.mrf.mxu0
    %v230 = vadd.f32 0.0, %v229
    %v231 = vpop.f32.mrf.mxu0
    %232 = vdwg.mxu0
    %v233 = vmul.f32 %v227, 0.027777778
    %v234 = vmul.f32 %v230, 0.027777778
    %v235 = vmul.f32 %v187, %v187
    %v236 = vmul.f32 %v188, %v188
    %v237 = vsub.f32 %v233, %v235
    %v238 = vsub.f32 %v234, %v236
    %v239 = vmax.f32 %v237, 0.0
    %v240 = vmax.f32 %v238, 0.0
    %v241 = vsub.f32 %v139, %v187
    %v242 = vsub.f32 %v142, %v188
    %v243 = vadd.f32 %v239, 1e-05
    %v244 = vadd.f32 %v240, 1e-05
    %v245 = vrsqrt.pop %v243
    %v246 = vrsqrt.pop %v244
    %v247 = vmul.f32 %v241, %v245
    %v248 = vmul.f32 %v242, %v246
    %v249 = vld [vmem:[#allocation7 + $0x1] sm:$0x1]
    %v250 = vlaneseq
    %v251 = vshrl.u32 %v250, 7
    %v252 = vsub.s32 0, %v251
    %v253 = vrot.slane %v249, %v252
    %v254 = vmul.f32 %v247, %v253
    %v255 = vmul.f32 %v248, %v253
    %v256 = vld [vmem:[#allocation7 + $0x2] sm:$0x1]
    %v257 = vlaneseq
    %v258 = vshrl.u32 %v257, 7
    %v259 = vsub.s32 0, %v258
    %v260 = vrot.slane %v256, %v259
    %v261 = vadd.f32 %v254, %v260
    %v262 = vadd.f32 %v255, %v260
    %v263 = vmax.f32 %v261, 0.0
    %v264 = vmax.f32 %v262, 0.0
    %v265 = vpack.c.bf16 %v264, %v263
    %v266 = vld [vmem:[#allocation8] sm:$0xf]
    %v267 = vld [vmem:[#allocation8 + $0x4] sm:$0xf]
    %v268 = vld [vmem:[#allocation8 + $0x8] sm:$0xf]
    %v269 = vld [vmem:[#allocation8 + $0xc] sm:$0xf]
    %v270 = vld [vmem:[#allocation8 + $0x10] sm:$0xf]
    %v271 = vld [vmem:[#allocation8 + $0x14] sm:$0xf]
    %v272 = vld [vmem:[#allocation8 + $0x18] sm:$0xf]
    %v273 = vld [vmem:[#allocation8 + $0x1c] sm:$0xf]
    %v274 = vld [vmem:[#allocation8 + $0x20] sm:$0xf]
    %v275 = vld [vmem:[#allocation8 + $0x24] sm:$0xf]
    %v276 = vld [vmem:[#allocation8 + $0x28] sm:$0xf]
    %v277 = vld [vmem:[#allocation8 + $0x2c] sm:$0xf]
    %v278 = vld [vmem:[#allocation8 + $0x30] sm:$0xf]
    %v279 = vld [vmem:[#allocation8 + $0x34] sm:$0xf]
    %v280 = vld [vmem:[#allocation8 + $0x38] sm:$0xf]
    %v281 = vld [vmem:[#allocation8 + $0x3c] sm:$0xf]
    %v282 = vld [vmem:[%s4] sm:$0x1]
    %v284 = vlaneseq
    %v285 = vshrl.u32 %v284, 7
    %v286 = vsub.s32 0, %v285
    %v287 = vrot.slane %v282, %v286
    %v305 = vunpack.c.l.b16 %v266
    %v306 = vunpack.c.l.b16 %v267
    %v307 = vunpack.c.l.b16 %v268
    %v308 = vunpack.c.l.b16 %v269
    %v309 = vunpack.c.l.b16 %v270
    %v310 = vunpack.c.l.b16 %v271
    %v311 = vunpack.c.l.b16 %v272
    %v312 = vunpack.c.l.b16 %v273
    %v313 = vunpack.c.l.b16 %v274
    %v314 = vunpack.c.l.b16 %v275
    %v315 = vunpack.c.l.b16 %v276
    %v316 = vunpack.c.l.b16 %v277
    %v317 = vunpack.c.l.b16 %v278
    %v318 = vunpack.c.l.b16 %v279
    %v319 = vunpack.c.l.b16 %v280
    %v320 = vunpack.c.l.b16 %v281
    %v321 = vpack.c.b16 %v306, %v305
    %v322 = vpack.c.b16 %v308, %v307
    %v323 = vpack.c.b16 %v310, %v309
    %v324 = vpack.c.b16 %v312, %v311
    %v325 = vpack.c.b16 %v314, %v313
    %v326 = vpack.c.b16 %v316, %v315
    %v327 = vpack.c.b16 %v318, %v317
    %v328 = vpack.c.b16 %v320, %v319
    %337 = vmatprep.subr.bf16.mxu0 0
    %338 = vmatpush1.bf16.msra.mxu0 %v328
    %339 = vmatprep.subr.bf16.mxu0 0
    %340 = vmatpush1.bf16.msra.mxu0 %v327
    %341 = vmatprep.subr.bf16.mxu0 0
    %342 = vmatpush1.bf16.msra.mxu0 %v326
    %343 = vmatprep.subr.bf16.mxu0 0
    %344 = vmatpush1.bf16.msra.mxu0 %v325
    %345 = vmatprep.subr.bf16.mxu0 0
    %346 = vmatpush1.bf16.msra.mxu0 %v324
    %347 = vmatprep.subr.bf16.mxu0 0
    %348 = vmatpush1.bf16.msra.mxu0 %v323
    %349 = vmatprep.subr.bf16.mxu0 0
    %350 = vmatpush1.bf16.msra.mxu0 %v322
    %351 = vmatprep.subr.bf16.mxu0 0
    %352 = vmatpush1.bf16.msra.mxu0 %v321
    %353 = vmatprep.subr.bf16.mxu0 0
    %354 = vmatpush2.bf16.msra.mxu0 0
    %355 = vmatprep.subr.bf16.mxu0 0
    %356 = vmatpush2.bf16.msra.mxu0 0
    %357 = vmatprep.subr.bf16.mxu0 0
    %358 = vmatpush2.bf16.msra.mxu0 0
    %359 = vmatprep.subr.bf16.mxu0 0
    %360 = vmatpush2.bf16.msra.mxu0 0
    %361 = vmatprep.subr.bf16.mxu0 0
    %362 = vmatpush2.bf16.msra.mxu0 0
    %363 = vmatprep.subr.bf16.mxu0 0
    %364 = vmatpush2.bf16.msra.mxu0 0
    %365 = vmatprep.subr.bf16.mxu0 0
    %366 = vmatpush2.bf16.msra.mxu0 0
    %367 = vmatprep.subr.bf16.mxu0 0
    %368 = vmatpush2.bf16.msra.mxu0 0
    %369 = vmatprep.mubr.bf16.mxu0 0
    %370 = vmatmul.mubr.bf16.gmra.mxu0 %v265
    %v371 = vpop.f32.mrf.mxu0
    %v372 = vadd.f32 %v287, %v371
    %v373 = vpop.f32.mrf.mxu0
    %v374 = vpop.f32.mrf.mxu0
    %v375 = vadd.f32 %v287, %v374
    %v376 = vpop.f32.mrf.mxu0
    %377 = vdwg.mxu0
    %378 = vmax.xlane.f32.xlu0 %v372
    %v379 = vpop.xlane.xlu0 %378
    %380 = vmax.xlane.f32.xlu0 %v375
    %v381 = vpop.xlane.xlu0 %380
    %v382 = vsub.f32 %v372, %v379
    %v383 = vsub.f32 %v375, %v381
    %v384 = vmul.f32 %v382, 1.442695
    %v385 = vpow.pop %v384
    %v386 = vmul.f32 %v383, 1.442695
    %v387 = vpow.pop %v386
    %v388 = vpack.c.bf16 %v387, %v385
    %389 = vmatprep.subr.bf16.mxu0 0
    %390 = vmatpush1.bf16.msra.mxu0 1065369472
    %391 = vmatprep.subr.bf16.mxu0 0
    %392 = vmatpush1.bf16.msra.mxu0 1065369472
    %393 = vmatprep.subr.bf16.mxu0 0
    %394 = vmatpush1.bf16.msra.mxu0 1065369472
    %395 = vmatprep.subr.bf16.mxu0 0
    %396 = vmatpush1.bf16.msra.mxu0 1065369472
    %397 = vmatprep.subr.bf16.mxu0 0
    %398 = vmatpush1.bf16.msra.mxu0 1065369472
    %399 = vmatprep.subr.bf16.mxu0 0
    %400 = vmatpush1.bf16.msra.mxu0 1065369472
    %401 = vmatprep.subr.bf16.mxu0 0
    %402 = vmatpush1.bf16.msra.mxu0 1065369472
    %403 = vmatprep.subr.bf16.mxu0 0
    %404 = vmatpush1.bf16.msra.mxu0 1065369472
    %405 = vmatprep.subr.bf16.mxu0 0
    %406 = vmatpush2.bf16.msra.mxu0 0
    %407 = vmatprep.subr.bf16.mxu0 0
    %408 = vmatpush2.bf16.msra.mxu0 0
    %409 = vmatprep.subr.bf16.mxu0 0
    %410 = vmatpush2.bf16.msra.mxu0 0
    %411 = vmatprep.subr.bf16.mxu0 0
    %412 = vmatpush2.bf16.msra.mxu0 0
    %413 = vmatprep.subr.bf16.mxu0 0
    %414 = vmatpush2.bf16.msra.mxu0 0
    %415 = vmatprep.subr.bf16.mxu0 0
    %416 = vmatpush2.bf16.msra.mxu0 0
    %417 = vmatprep.subr.bf16.mxu0 0
    %418 = vmatpush2.bf16.msra.mxu0 0
    %419 = vmatprep.subr.bf16.mxu0 0
    %420 = vmatpush2.bf16.msra.mxu0 0
    %421 = vmatprep.mubr.bf16.mxu0 0
    %422 = vmatmul.mubr.bf16.gmra.mxu0 %v388
    %v423 = vpop.f32.mrf.mxu0
    %v424 = vadd.f32 0.0, %v423
    %v425 = vpop.f32.mrf.mxu0
    %v426 = vpop.f32.mrf.mxu0
    %v427 = vadd.f32 0.0, %v426
    %v428 = vpop.f32.mrf.mxu0
    %429 = vdwg.mxu0
    %v430 = vrcp.pop %v424
    %v431 = vrcp.pop %v427
    %v432 = vmul.f32 %v385, %v430
    %v433 = vmul.f32 %v387, %v431
    %v434 = vpack.c.bf16 %v433, %v432
    %v436 = vunpack.c.l.b16 %v434
    %v437 = vunpack.c.h.b16 %v434
    %v438 = vpack.c.b16 %v436, %v436
    %v439 = vpack.c.b16 %v437, %v437
    %442 = vst [vmem:[#allocation10] sm:$0xf] %v438
    %443 = vst [vmem:[#allocation10 + $0x4] sm:$0xf] %v439
    // Predicated region
    $region38: #{tpu_custom_call.1} parent=1 // pred_check
      _
    $region39: #{tpu_custom_call.1} parent=1 // pred_check_branch
      %445 = sbr.rel (0) target = $region41
    $region40: #{tpu_custom_call.1} parent=1 // pred_region
      %s447 = ssub.s32 128, 128
      %448 = vsyncadd [#allocation4], %s447
      %s449 = sshll.u32 [#allocation10], 4
      %s450 = int_to_ptr.vmem [resolvable:$true] %s449
      %455 = dma.vmem_to_hbm [thread:$0]  %s450, 128, %s5, [#allocation4], 64, 64, 4
    $region41: #{tpu_custom_call.1} parent=1 // pred_fallthru
      _
    // Predicated region
    $region42: #{tpu_custom_call.1} parent=1 // pred_check
      _
    $region43: #{tpu_custom_call.1} parent=1 // pred_check_branch
      %457 = sbr.rel (0) target = $region45
    $region44: #{tpu_custom_call.1} parent=1 // pred_region
      %458 = dma.done [#allocation4], 128
    $region45: #{tpu_custom_call.1} parent=1 // pred_fallthru
      _
    %459 = vsyncpa [#allocation3], 1
    %460 = vsyncpa [#allocation6], 1
    %461 = vsyncpa [#allocation9], 1
    %462 = vsyncpa [#allocation4], 1

</llo_original>
